<compile_context>
chip_gen: v7x
topology: tpu7x:2x2x1
jax: 0.10.0
libtpu: 0.0.40
codegen_flags: <defaults>
</compile_context>

<pallas_src>
import jax
import jax.numpy as jnp
from jax.experimental import pallas as pl
from jax.experimental.pallas import tpu as pltpu

LN_EPS = 1e-5  # PyTorch nn.LayerNorm default


def _layer_norm(x, gamma, beta):
    """Centered two-pass LayerNorm in f32 (matches PyTorch nn.LayerNorm)."""
    mu = jnp.mean(x, axis=-1, keepdims=True)
    xc = x - mu
    var = jnp.mean(xc * xc, axis=-1, keepdims=True)
    return xc * jax.lax.rsqrt(var + LN_EPS) * gamma + beta


def _head_kernel(x_ref,
                 w1_ref, b1_ref, g1_ref, be1_ref,
                 w2_ref, b2_ref, g2_ref, be2_ref,
                 w3_ref, b3_ref,
                 o_ref):
    # --- Linear(H, H): bf16 MXU matmul, f32 accumulate.  In-kernel bf16 cast
    #     of the streamed f32 input (hidden under the MXU). ---
    x = x_ref[...].astype(jnp.bfloat16)                   # (TB, H)
    h1 = jnp.dot(x, w1_ref[...], preferred_element_type=jnp.float32)
    h1 = jnp.maximum(h1 + b1_ref[...], 0.0)               # Dropout = identity (eval)
    h1 = _layer_norm(h1, g1_ref[...], be1_ref[...])       # f32 LayerNorm(H)

    # --- Linear(H, H//2): bf16 MXU matmul, f32 accumulate ---
    h2 = jnp.dot(h1.astype(jnp.bfloat16), w2_ref[...],
                 preferred_element_type=jnp.float32)
    h2 = jnp.maximum(h2 + b2_ref[...], 0.0)
    h2 = _layer_norm(h2, g2_ref[...], be2_ref[...])       # f32 LayerNorm(H//2)

    # --- Linear(H//2, 1): VPU multiply + lane reduction (skip 1-col MXU).
    #     Store as a lane-dense (1, TB) row (cheap XLU relayout) so writes are
    #     full unmasked lane stores instead of 1-lane masked stores. ---
    out = jnp.sum(h2 * w3_ref[...], axis=-1, keepdims=True) + b3_ref[...]
    o_ref[...] = out.reshape(1, -1).astype(o_ref.dtype)


def _resident(shape, pipeline_mode=None):
    """Constant block index -> Pallas keeps the block VMEM-resident across grid
    steps (no re-DMA).  Default-arg capture avoids late-binding lambda bugs."""
    zeros = (0,) * len(shape)
    index_map = lambda i, _z=zeros: _z
    if pipeline_mode is None:
        return pl.BlockSpec(shape, index_map)
    return pl.BlockSpec(shape, index_map, pipeline_mode=pipeline_mode)


def _vmem_capacity_bytes():
    try:
        return int(pltpu.get_tpu_info().vmem_capacity_bytes)
    except Exception:
        return 64 << 20  # conservative fallback (v7x per-TC VMEM)


def _pick_batch_tile(B, H, vmem_cap):
    """Batch tile: 512 on 128 MiB parts (v5e/v6e), 256 on 64 MiB parts (v7x),
    shrunk if the post-weight VMEM budget can't carry it."""
    H2 = H // 2
    # Worst case: double-buffered resident bf16 weights (fallback path).
    w_bytes = 2 * ((H * H + H * H2) * 2)
    small_bytes = 2 * (4 * H + 3 * H2 + 2) * 4
    headroom = 8 << 20
    avail = vmem_cap - headroom - w_bytes - small_bytes
    # Per-batch-row VMEM: x f32 (double-buffered), h1 f32 + bf16 cast, h2 f32
    # (pre/post LN), out f32 (double-buffered).
    per_row = 2 * H * 4 + H * 4 + H * 2 + 2 * H2 * 4 + 2 * 4
    desired = 512 if vmem_cap >= (96 << 20) else 256
    if avail <= per_row * 8:
        # TODO(synk): for very large H on small-VMEM parts, K-tile w1 (stream
        # (Hk, H) slabs with an f32 accumulator) instead of shrinking TB.
        tb = 8
    else:
        tb = min(desired, (avail // per_row) // 8 * 8)
    if tb >= B:
        return B
    if tb >= 256:
        tb = (tb // 256) * 256  # MXU-friendly on v6e/v7x
    return max(8, tb)


def _vmem_limit_bytes(TB, H, vmem_cap):
    """Realistic budget: weights (worst-case double-buffered), small params,
    per-tile activations/intermediates, plus Mosaic-scratch headroom; never
    requests all of physical VMEM."""
    H2 = H // 2
    w_bytes = 2 * ((H * H + H * H2) * 2)
    small_bytes = 2 * (4 * H + 3 * H2 + 2) * 4
    act_bytes = TB * (2 * H * 4 + H * 4 + H * 2 + 2 * H2 * 4 + 2 * 4)
    need = w_bytes + small_bytes + act_bytes + (16 << 20)
    return int(max(16 << 20, min(need, vmem_cap - (8 << 20))))


def partial_ensemble_head(x, params, *, batch_tile=None):
    """x: (B, H) float32.  params: kernel-ready dict from prepare_params()
    (bf16 pre-transposed weight matrices, f32 biases / LN params, w3 as a
    (1, H//2) row).  Returns (B, 1) float32."""
    B, H = x.shape
    H2 = H // 2
    w1, w2, w3 = params["w1"], params["w2"], params["w3"]

    vmem_cap = _vmem_capacity_bytes()
    TB = batch_tile if batch_tile is not None else _pick_batch_tile(B, H, vmem_cap)
    TB = min(TB, B)
    num_tiles = pl.cdiv(B, TB)
    vmem_limit = _vmem_limit_bytes(TB, H, vmem_cap)

    cost = pl.CostEstimate(
        flops=2 * B * H * H + 2 * B * H * H2 + 2 * B * H2,
        transcendentals=2 * B,  # one rsqrt per row per LayerNorm
        bytes_accessed=(B * H * 4 + (H * H + H * H2) * 2
                        + (4 * H + 3 * H2 + 2) * 4 + num_tiles * TB * 4))

    def build(weight_mode):
        in_specs = [
            pl.BlockSpec((TB, H), lambda i: (i, 0)),      # x streamed per tile (f32)
            _resident(w1.shape, weight_mode),
            _resident(params["b1"].shape),
            _resident(params["ln1_g"].shape),
            _resident(params["ln1_b"].shape),
            _resident(w2.shape, weight_mode),
            _resident(params["b2"].shape),
            _resident(params["ln2_g"].shape),
            _resident(params["ln2_b"].shape),
            _resident(w3.shape),
            _resident(params["b3"].shape),
        ]
        # Lane-dense output: each grid step writes a full (1, TB) row.
        out_spec = pl.BlockSpec((1, TB), lambda i: (i, 0))
        return pl.pallas_call(
            _head_kernel,
            out_shape=jax.ShapeDtypeStruct((num_tiles, TB), jnp.float32),
            grid=(num_tiles,),
            in_specs=in_specs,
            out_specs=out_spec,
            compiler_params=pltpu.CompilerParams(
                dimension_semantics=("parallel",),        # dual-TC sharding on v7x
                vmem_limit_bytes=vmem_limit),
            cost_estimate=cost,
        )

    args = (x, w1, params["b1"], params["ln1_g"], params["ln1_b"],
            w2, params["b2"], params["ln2_g"], params["ln2_b"],
            w3, params["b3"])
    try:
        # Single-buffer the resident weights (constant index_map -> the block
        # never changes), halving their VMEM footprint on v7x.
        out = build(pl.Buffered(1))(*args)
    except Exception:
        # pipeline_mode unsupported on this jax/libtpu build: fall back to
        # default buffering (constant-index blocks are still DMA'd only once).
        out = build(None)(*args)

    # Undo the lane-dense (num_tiles, TB) packing.  When B % TB != 0 the
    # padded rows ran LN/rsqrt on uninitialized VMEM; they are dropped here,
    # so any Inf/NaN in them is expected and benign.
    return out.reshape(-1)[:B].reshape(B, 1)


def init_params(key, hidden_size):
    """Deterministic Kaiming-normal (fan_in, relu) init matching _init_weights.
    Weights stored pre-transposed as (in_features, out_features), f32."""
    h = hidden_size
    h2 = hidden_size // 2
    k1, k2, k3 = jax.random.split(key, 3)

    def kaiming(k, fan_in, fan_out):
        std = (2.0 / fan_in) ** 0.5
        return jax.random.normal(k, (fan_in, fan_out), jnp.float32) * std

    return {
        "w1": kaiming(k1, h, h),
        "b1": jnp.zeros((1, h), jnp.float32),
        "ln1_g": jnp.ones((1, h), jnp.float32),
        "ln1_b": jnp.zeros((1, h), jnp.float32),
        "w2": kaiming(k2, h, h2),
        "b2": jnp.zeros((1, h2), jnp.float32),
        "ln2_g": jnp.ones((1, h2), jnp.float32),
        "ln2_b": jnp.zeros((1, h2), jnp.float32),
        "w3": kaiming(k3, h2, 1),
        "b3": jnp.zeros((1, 1), jnp.float32),
    }


def prepare_params(p):
    """One-time conversion to kernel-ready storage: bf16 big weight matrices
    (so the cast isn't re-executed every call) and w3 as a (1, H//2) row."""
    q = dict(p)
    q["w1"] = p["w1"].astype(jnp.bfloat16)
    q["w2"] = p["w2"].astype(jnp.bfloat16)
    q["w3"] = p["w3"].reshape(1, -1).astype(jnp.float32)
    return q


def _ln_ref(x, gamma, beta):
    mu = jnp.mean(x, axis=-1, keepdims=True)
    var = jnp.mean((x - mu) ** 2, axis=-1, keepdims=True)
    return (x - mu) * jax.lax.rsqrt(var + LN_EPS) * gamma + beta


def reference_forward(x, p):
    """Pure-JAX reference mirroring the kernel's numerics (bf16 matmuls,
    f32 accumulation, f32 two-pass LN), eval-mode dropout."""
    xb = x.astype(jnp.bfloat16)
    w1 = p["w1"].astype(jnp.bfloat16)
    w2 = p["w2"].astype(jnp.bfloat16)
    h1 = jnp.dot(xb, w1, preferred_element_type=jnp.float32) + p["b1"]
    h1 = jnp.maximum(h1, 0.0)
    h1 = _ln_ref(h1, p["ln1_g"], p["ln1_b"])
    h2 = jnp.dot(h1.astype(jnp.bfloat16), w2,
                 preferred_element_type=jnp.float32) + p["b2"]
    h2 = jnp.maximum(h2, 0.0)
    h2 = _ln_ref(h2, p["ln2_g"], p["ln2_b"])
    return h2 @ p["w3"] + p["b3"]


if __name__ == "__main__":
    key = jax.random.PRNGKey(0)
    k_x, k_p = jax.random.split(key)

    batch, hidden = 8, 32
    x = jax.random.normal(k_x, (batch, hidden), jnp.float32)
    params = init_params(k_p, hidden)
    kparams = prepare_params(params)

    out = partial_ensemble_head(x, kparams)
    out = jax.block_until_ready(out)

    ref = reference_forward(x, params)
    assert out.shape == (batch, 1)
    assert jnp.allclose(out, ref, atol=2e-3, rtol=2e-3), (out, ref)

    # TODO(synk): Dropout is treated as identity (eval mode); training-mode
    # stochastic dropout would use pltpu.prng_seed / prng_random_bits.
    print("KERNEL_OK")
</pallas_src>

<mosaic_0001>
module attributes {stable_mosaic.version = 11 : i64} {
  func.func @_head_kernel(%arg0: i32, %arg1: memref<8x32xf32, #tpu.memory_space<vmem>>, %arg2: memref<32x32xbf16, #tpu.memory_space<vmem>>, %arg3: memref<1x32xf32, #tpu.memory_space<vmem>>, %arg4: memref<1x32xf32, #tpu.memory_space<vmem>>, %arg5: memref<1x32xf32, #tpu.memory_space<vmem>>, %arg6: memref<32x16xbf16, #tpu.memory_space<vmem>>, %arg7: memref<1x16xf32, #tpu.memory_space<vmem>>, %arg8: memref<1x16xf32, #tpu.memory_space<vmem>>, %arg9: memref<1x16xf32, #tpu.memory_space<vmem>>, %arg10: memref<1x16xf32, #tpu.memory_space<vmem>>, %arg11: memref<1x1xf32, #tpu.memory_space<vmem>>, %arg12: memref<1x8xf32, #tpu.memory_space<vmem>>) attributes {dimension_semantics = [#tpu.dimension_semantics<parallel>], iteration_bounds = array<i64: 1>, scalar_prefetch = 0 : i64, scratch_operands = 0 : i64, tpu.core_type = #tpu.core_type<tc>, window_params = [{transform_indices = @transform_0, window_bounds = array<i64: 8, 32>}, {pipeline_mode = #tpu.pipeline_mode<synchronous>, transform_indices = @transform_1, window_bounds = array<i64: 32, 32>}, {pipeline_mode = #tpu.pipeline_mode<synchronous>, transform_indices = @transform_2, window_bounds = array<i64: 1, 32>}, {pipeline_mode = #tpu.pipeline_mode<synchronous>, transform_indices = @transform_3, window_bounds = array<i64: 1, 32>}, {pipeline_mode = #tpu.pipeline_mode<synchronous>, transform_indices = @transform_4, window_bounds = array<i64: 1, 32>}, {pipeline_mode = #tpu.pipeline_mode<synchronous>, transform_indices = @transform_5, window_bounds = array<i64: 32, 16>}, {pipeline_mode = #tpu.pipeline_mode<synchronous>, transform_indices = @transform_6, window_bounds = array<i64: 1, 16>}, {pipeline_mode = #tpu.pipeline_mode<synchronous>, transform_indices = @transform_7, window_bounds = array<i64: 1, 16>}, {pipeline_mode = #tpu.pipeline_mode<synchronous>, transform_indices = @transform_8, window_bounds = array<i64: 1, 16>}, {pipeline_mode = #tpu.pipeline_mode<synchronous>, transform_indices = @transform_9, window_bounds = array<i64: 1, 16>}, {pipeline_mode = #tpu.pipeline_mode<synchronous>, transform_indices = @transform_10, window_bounds = array<i64: 1, 1>}, {transform_indices = @transform_11, window_bounds = array<i64: 1, 8>}]} {
    %c0 = arith.constant 0 : index
    %c0_0 = arith.constant 0 : index
    %0 = vector.load %arg1[%c0, %c0_0] : memref<8x32xf32, #tpu.memory_space<vmem>>, vector<8x32xf32>
    %1 = arith.truncf %0 : vector<8x32xf32> to vector<8x32xbf16>
    %c0_1 = arith.constant 0 : index
    %c0_2 = arith.constant 0 : index
    %2 = vector.load %arg2[%c0_1, %c0_2] : memref<32x32xbf16, #tpu.memory_space<vmem>>, vector<32x32xbf16>
    %cst = arith.constant dense<0.000000e+00> : vector<8x32xf32>
    %3 = tpu.matmul %1, %2, %cst {dimension_numbers = #tpu.dot_dimension_numbers<[1], [0], [0], [1], [0, 0, 1, 1], [], []>} : vector<8x32xbf16>, vector<32x32xbf16>, vector<8x32xf32> -> vector<8x32xf32>
    %c0_3 = arith.constant 0 : index
    %c0_4 = arith.constant 0 : index
    %4 = vector.load %arg3[%c0_3, %c0_4] : memref<1x32xf32, #tpu.memory_space<vmem>>, vector<1x32xf32>
    %5 = vector.broadcast %4 : vector<1x32xf32> to vector<8x32xf32>
    %6 = arith.addf %3, %5 : vector<8x32xf32>
    %cst_5 = arith.constant 0.000000e+00 : f32
    %7 = vector.broadcast %cst_5 : f32 to vector<8x32xf32>
    %8 = arith.maximumf %6, %7 : vector<8x32xf32>
    %c0_6 = arith.constant 0 : index
    %c0_7 = arith.constant 0 : index
    %9 = vector.load %arg4[%c0_6, %c0_7] : memref<1x32xf32, #tpu.memory_space<vmem>>, vector<1x32xf32>
    %c0_8 = arith.constant 0 : index
    %c0_9 = arith.constant 0 : index
    %10 = vector.load %arg5[%c0_8, %c0_9] : memref<1x32xf32, #tpu.memory_space<vmem>>, vector<1x32xf32>
    %cst_10 = arith.constant dense<0.000000e+00> : vector<8xf32>
    %11 = vector.multi_reduction <add>, %8, %cst_10 [1] : vector<8x32xf32> to vector<8xf32>
    %12 = vector.shape_cast %11 : vector<8xf32> to vector<8x1xf32>
    %cst_11 = arith.constant 3.200000e+01 : f32
    %13 = vector.broadcast %cst_11 : f32 to vector<8x1xf32>
    %14 = arith.divf %12, %13 : vector<8x1xf32>
    %15 = vector.broadcast %14 : vector<8x1xf32> to vector<8x32xf32>
    %16 = arith.subf %8, %15 : vector<8x32xf32>
    %17 = arith.mulf %16, %16 : vector<8x32xf32>
    %cst_12 = arith.constant dense<0.000000e+00> : vector<8xf32>
    %18 = vector.multi_reduction <add>, %17, %cst_12 [1] : vector<8x32xf32> to vector<8xf32>
    %19 = vector.shape_cast %18 : vector<8xf32> to vector<8x1xf32>
    %cst_13 = arith.constant 3.200000e+01 : f32
    %20 = vector.broadcast %cst_13 : f32 to vector<8x1xf32>
    %21 = arith.divf %19, %20 : vector<8x1xf32>
    %cst_14 = arith.constant 9.99999974E-6 : f32
    %22 = vector.broadcast %cst_14 : f32 to vector<8x1xf32>
    %23 = arith.addf %21, %22 : vector<8x1xf32>
    %24 = math.rsqrt %23 : vector<8x1xf32>
    %25 = vector.broadcast %24 : vector<8x1xf32> to vector<8x32xf32>
    %26 = arith.mulf %16, %25 : vector<8x32xf32>
    %27 = vector.broadcast %9 : vector<1x32xf32> to vector<8x32xf32>
    %28 = arith.mulf %26, %27 : vector<8x32xf32>
    %29 = vector.broadcast %10 : vector<1x32xf32> to vector<8x32xf32>
    %30 = arith.addf %28, %29 : vector<8x32xf32>
    %31 = arith.truncf %30 : vector<8x32xf32> to vector<8x32xbf16>
    %c0_15 = arith.constant 0 : index
    %c0_16 = arith.constant 0 : index
    %32 = vector.load %arg6[%c0_15, %c0_16] : memref<32x16xbf16, #tpu.memory_space<vmem>>, vector<32x16xbf16>
    %cst_17 = arith.constant dense<0.000000e+00> : vector<8x16xf32>
    %33 = tpu.matmul %31, %32, %cst_17 {dimension_numbers = #tpu.dot_dimension_numbers<[1], [0], [0], [1], [0, 0, 1, 1], [], []>} : vector<8x32xbf16>, vector<32x16xbf16>, vector<8x16xf32> -> vector<8x16xf32>
    %c0_18 = arith.constant 0 : index
    %c0_19 = arith.constant 0 : index
    %34 = vector.load %arg7[%c0_18, %c0_19] : memref<1x16xf32, #tpu.memory_space<vmem>>, vector<1x16xf32>
    %35 = vector.broadcast %34 : vector<1x16xf32> to vector<8x16xf32>
    %36 = arith.addf %33, %35 : vector<8x16xf32>
    %cst_20 = arith.constant 0.000000e+00 : f32
    %37 = vector.broadcast %cst_20 : f32 to vector<8x16xf32>
    %38 = arith.maximumf %36, %37 : vector<8x16xf32>
    %c0_21 = arith.constant 0 : index
    %c0_22 = arith.constant 0 : index
    %39 = vector.load %arg8[%c0_21, %c0_22] : memref<1x16xf32, #tpu.memory_space<vmem>>, vector<1x16xf32>
    %c0_23 = arith.constant 0 : index
    %c0_24 = arith.constant 0 : index
    %40 = vector.load %arg9[%c0_23, %c0_24] : memref<1x16xf32, #tpu.memory_space<vmem>>, vector<1x16xf32>
    %cst_25 = arith.constant dense<0.000000e+00> : vector<8xf32>
    %41 = vector.multi_reduction <add>, %38, %cst_25 [1] : vector<8x16xf32> to vector<8xf32>
    %42 = vector.shape_cast %41 : vector<8xf32> to vector<8x1xf32>
    %cst_26 = arith.constant 1.600000e+01 : f32
    %43 = vector.broadcast %cst_26 : f32 to vector<8x1xf32>
    %44 = arith.divf %42, %43 : vector<8x1xf32>
    %45 = vector.broadcast %44 : vector<8x1xf32> to vector<8x16xf32>
    %46 = arith.subf %38, %45 : vector<8x16xf32>
    %47 = arith.mulf %46, %46 : vector<8x16xf32>
    %cst_27 = arith.constant dense<0.000000e+00> : vector<8xf32>
    %48 = vector.multi_reduction <add>, %47, %cst_27 [1] : vector<8x16xf32> to vector<8xf32>
    %49 = vector.shape_cast %48 : vector<8xf32> to vector<8x1xf32>
    %cst_28 = arith.constant 1.600000e+01 : f32
    %50 = vector.broadcast %cst_28 : f32 to vector<8x1xf32>
    %51 = arith.divf %49, %50 : vector<8x1xf32>
    %cst_29 = arith.constant 9.99999974E-6 : f32
    %52 = vector.broadcast %cst_29 : f32 to vector<8x1xf32>
    %53 = arith.addf %51, %52 : vector<8x1xf32>
    %54 = math.rsqrt %53 : vector<8x1xf32>
    %55 = vector.broadcast %54 : vector<8x1xf32> to vector<8x16xf32>
    %56 = arith.mulf %46, %55 : vector<8x16xf32>
    %57 = vector.broadcast %39 : vector<1x16xf32> to vector<8x16xf32>
    %58 = arith.mulf %56, %57 : vector<8x16xf32>
    %59 = vector.broadcast %40 : vector<1x16xf32> to vector<8x16xf32>
    %60 = arith.addf %58, %59 : vector<8x16xf32>
    %c0_30 = arith.constant 0 : index
    %c0_31 = arith.constant 0 : index
    %61 = vector.load %arg10[%c0_30, %c0_31] : memref<1x16xf32, #tpu.memory_space<vmem>>, vector<1x16xf32>
    %62 = vector.broadcast %61 : vector<1x16xf32> to vector<8x16xf32>
    %63 = arith.mulf %60, %62 : vector<8x16xf32>
    %cst_32 = arith.constant dense<0.000000e+00> : vector<8xf32>
    %64 = vector.multi_reduction <add>, %63, %cst_32 [1] : vector<8x16xf32> to vector<8xf32>
    %65 = vector.shape_cast %64 : vector<8xf32> to vector<8x1xf32>
    %c0_33 = arith.constant 0 : index
    %c0_34 = arith.constant 0 : index
    %66 = vector.load %arg11[%c0_33, %c0_34] : memref<1x1xf32, #tpu.memory_space<vmem>>, vector<1x1xf32>
    %67 = vector.broadcast %66 : vector<1x1xf32> to vector<8x1xf32>
    %68 = arith.addf %65, %67 : vector<8x1xf32>
    %69 = vector.shape_cast %68 : vector<8x1xf32> to vector<1x8xf32>
    %c0_35 = arith.constant 0 : index
    %c0_36 = arith.constant 0 : index
    %70 = vector.load %arg12[%c0_35, %c0_36] : memref<1x8xf32, #tpu.memory_space<vmem>>, vector<1x8xf32>
    tpu.vector_store %arg12[%c0_35, %c0_36], %69 {strides = array<i32>} : memref<1x8xf32, #tpu.memory_space<vmem>>, vector<1x8xf32>,
    return
  }
  func.func @transform_0(%arg0: i32) -> (i32, i32) {
    %c0_i32 = arith.constant 0 : i32
    %c0_i32_0 = arith.constant 0 : i32
    return %arg0, %c0_i32 : i32, i32
  }
  func.func @transform_1(%arg0: i32) -> (i32, i32) {
    %c0_i32 = arith.constant 0 : i32
    %c0_i32_0 = arith.constant 0 : i32
    %c0_i32_1 = arith.constant 0 : i32
    return %c0_i32, %c0_i32_0 : i32, i32
  }
  func.func @transform_2(%arg0: i32) -> (i32, i32) {
    %c0_i32 = arith.constant 0 : i32
    %c0_i32_0 = arith.constant 0 : i32
    %c0_i32_1 = arith.constant 0 : i32
    return %c0_i32, %c0_i32_0 : i32, i32
  }
  func.func @transform_3(%arg0: i32) -> (i32, i32) {
    %c0_i32 = arith.constant 0 : i32
    %c0_i32_0 = arith.constant 0 : i32
    %c0_i32_1 = arith.constant 0 : i32
    return %c0_i32, %c0_i32_0 : i32, i32
  }
  func.func @transform_4(%arg0: i32) -> (i32, i32) {
    %c0_i32 = arith.constant 0 : i32
    %c0_i32_0 = arith.constant 0 : i32
    %c0_i32_1 = arith.constant 0 : i32
    return %c0_i32, %c0_i32_0 : i32, i32
  }
  func.func @transform_5(%arg0: i32) -> (i32, i32) {
    %c0_i32 = arith.constant 0 : i32
    %c0_i32_0 = arith.constant 0 : i32
    %c0_i32_1 = arith.constant 0 : i32
    return %c0_i32, %c0_i32_0 : i32, i32
  }
  func.func @transform_6(%arg0: i32) -> (i32, i32) {
    %c0_i32 = arith.constant 0 : i32
    %c0_i32_0 = arith.constant 0 : i32
    %c0_i32_1 = arith.constant 0 : i32
    return %c0_i32, %c0_i32_0 : i32, i32
  }
  func.func @transform_7(%arg0: i32) -> (i32, i32) {
    %c0_i32 = arith.constant 0 : i32
    %c0_i32_0 = arith.constant 0 : i32
    %c0_i32_1 = arith.constant 0 : i32
    return %c0_i32, %c0_i32_0 : i32, i32
  }
  func.func @transform_8(%arg0: i32) -> (i32, i32) {
    %c0_i32 = arith.constant 0 : i32
    %c0_i32_0 = arith.constant 0 : i32
    %c0_i32_1 = arith.constant 0 : i32
    return %c0_i32, %c0_i32_0 : i32, i32
  }
  func.func @transform_9(%arg0: i32) -> (i32, i32) {
    %c0_i32 = arith.constant 0 : i32
    %c0_i32_0 = arith.constant 0 : i32
    %c0_i32_1 = arith.constant 0 : i32
    return %c0_i32, %c0_i32_0 : i32, i32
  }
  func.func @transform_10(%arg0: i32) -> (i32, i32) {
    %c0_i32 = arith.constant 0 : i32
    %c0_i32_0 = arith.constant 0 : i32
    %c0_i32_1 = arith.constant 0 : i32
    return %c0_i32, %c0_i32_0 : i32, i32
  }
  func.func @transform_11(%arg0: i32) -> (i32, i32) {
    %c0_i32 = arith.constant 0 : i32
    %c0_i32_0 = arith.constant 0 : i32
    return %arg0, %c0_i32 : i32, i32
  }
}

module attributes {stable_mosaic.version = 11 : i64} {
  func.func @_head_kernel(%arg0: i32, %arg1: memref<8x32xf32, #tpu.memory_space<vmem>>, %arg2: memref<32x32xbf16, #tpu.memory_space<vmem>>, %arg3: memref<1x32xf32, #tpu.memory_space<vmem>>, %arg4: memref<1x32xf32, #tpu.memory_space<vmem>>, %arg5: memref<1x32xf32, #tpu.memory_space<vmem>>, %arg6: memref<32x16xbf16, #tpu.memory_space<vmem>>, %arg7: memref<1x16xf32, #tpu.memory_space<vmem>>, %arg8: memref<1x16xf32, #tpu.memory_space<vmem>>, %arg9: memref<1x16xf32, #tpu.memory_space<vmem>>, %arg10: memref<1x16xf32, #tpu.memory_space<vmem>>, %arg11: memref<1x1xf32, #tpu.memory_space<vmem>>, %arg12: memref<1x8xf32, #tpu.memory_space<vmem>>) attributes {dimension_semantics = [#tpu.dimension_semantics<parallel>], iteration_bounds = array<i64: 1>, scalar_prefetch = 0 : i64, scratch_operands = 0 : i64, tpu.core_type = #tpu.core_type<tc>, window_params = [{transform_indices = @transform_0, window_bounds = array<i64: 8, 32>}, {pipeline_mode = #tpu.pipeline_mode<synchronous>, transform_indices = @transform_1, window_bounds = array<i64: 32, 32>}, {pipeline_mode = #tpu.pipeline_mode<synchronous>, transform_indices = @transform_2, window_bounds = array<i64: 1, 32>}, {pipeline_mode = #tpu.pipeline_mode<synchronous>, transform_indices = @transform_3, window_bounds = array<i64: 1, 32>}, {pipeline_mode = #tpu.pipeline_mode<synchronous>, transform_indices = @transform_4, window_bounds = array<i64: 1, 32>}, {pipeline_mode = #tpu.pipeline_mode<synchronous>, transform_indices = @transform_5, window_bounds = array<i64: 32, 16>}, {pipeline_mode = #tpu.pipeline_mode<synchronous>, transform_indices = @transform_6, window_bounds = array<i64: 1, 16>}, {pipeline_mode = #tpu.pipeline_mode<synchronous>, transform_indices = @transform_7, window_bounds = array<i64: 1, 16>}, {pipeline_mode = #tpu.pipeline_mode<synchronous>, transform_indices = @transform_8, window_bounds = array<i64: 1, 16>}, {pipeline_mode = #tpu.pipeline_mode<synchronous>, transform_indices = @transform_9, window_bounds = array<i64: 1, 16>}, {pipeline_mode = #tpu.pipeline_mode<synchronous>, transform_indices = @transform_10, window_bounds = array<i64: 1, 1>}, {transform_indices = @transform_11, window_bounds = array<i64: 1, 8>}]} {
    %c0 = arith.constant 0 : index
    %c0_0 = arith.constant 0 : index
    %0 = vector.load %arg1[%c0, %c0_0] : memref<8x32xf32, #tpu.memory_space<vmem>>, vector<8x32xf32>
    %1 = arith.truncf %0 : vector<8x32xf32> to vector<8x32xbf16>
    %c0_1 = arith.constant 0 : index
    %c0_2 = arith.constant 0 : index
    %2 = vector.load %arg2[%c0_1, %c0_2] : memref<32x32xbf16, #tpu.memory_space<vmem>>, vector<32x32xbf16>
    %cst = arith.constant dense<0.000000e+00> : vector<8x32xf32>
    %3 = tpu.matmul %1, %2, %cst {dimension_numbers = #tpu.dot_dimension_numbers<[1], [0], [0], [1], [0, 0, 1, 1], [], []>} : vector<8x32xbf16>, vector<32x32xbf16>, vector<8x32xf32> -> vector<8x32xf32>
    %c0_3 = arith.constant 0 : index
    %c0_4 = arith.constant 0 : index
    %4 = vector.load %arg3[%c0_3, %c0_4] : memref<1x32xf32, #tpu.memory_space<vmem>>, vector<1x32xf32>
    %5 = vector.broadcast %4 : vector<1x32xf32> to vector<8x32xf32>
    %6 = arith.addf %3, %5 : vector<8x32xf32>
    %cst_5 = arith.constant 0.000000e+00 : f32
    %7 = vector.broadcast %cst_5 : f32 to vector<8x32xf32>
    %8 = arith.maximumf %6, %7 : vector<8x32xf32>
    %c0_6 = arith.constant 0 : index
    %c0_7 = arith.constant 0 : index
    %9 = vector.load %arg4[%c0_6, %c0_7] : memref<1x32xf32, #tpu.memory_space<vmem>>, vector<1x32xf32>
    %c0_8 = arith.constant 0 : index
    %c0_9 = arith.constant 0 : index
    %10 = vector.load %arg5[%c0_8, %c0_9] : memref<1x32xf32, #tpu.memory_space<vmem>>, vector<1x32xf32>
    %cst_10 = arith.constant dense<0.000000e+00> : vector<8xf32>
    %11 = vector.multi_reduction <add>, %8, %cst_10 [1] : vector<8x32xf32> to vector<8xf32>
    %12 = vector.shape_cast %11 : vector<8xf32> to vector<8x1xf32>
    %cst_11 = arith.constant 3.200000e+01 : f32
    %13 = vector.broadcast %cst_11 : f32 to vector<8x1xf32>
    %14 = arith.divf %12, %13 : vector<8x1xf32>
    %15 = vector.broadcast %14 : vector<8x1xf32> to vector<8x32xf32>
    %16 = arith.subf %8, %15 : vector<8x32xf32>
    %17 = arith.mulf %16, %16 : vector<8x32xf32>
    %cst_12 = arith.constant dense<0.000000e+00> : vector<8xf32>
    %18 = vector.multi_reduction <add>, %17, %cst_12 [1] : vector<8x32xf32> to vector<8xf32>
    %19 = vector.shape_cast %18 : vector<8xf32> to vector<8x1xf32>
    %cst_13 = arith.constant 3.200000e+01 : f32
    %20 = vector.broadcast %cst_13 : f32 to vector<8x1xf32>
    %21 = arith.divf %19, %20 : vector<8x1xf32>
    %cst_14 = arith.constant 9.99999974E-6 : f32
    %22 = vector.broadcast %cst_14 : f32 to vector<8x1xf32>
    %23 = arith.addf %21, %22 : vector<8x1xf32>
    %24 = math.rsqrt %23 : vector<8x1xf32>
    %25 = vector.broadcast %24 : vector<8x1xf32> to vector<8x32xf32>
    %26 = arith.mulf %16, %25 : vector<8x32xf32>
    %27 = vector.broadcast %9 : vector<1x32xf32> to vector<8x32xf32>
    %28 = arith.mulf %26, %27 : vector<8x32xf32>
    %29 = vector.broadcast %10 : vector<1x32xf32> to vector<8x32xf32>
    %30 = arith.addf %28, %29 : vector<8x32xf32>
    %31 = arith.truncf %30 : vector<8x32xf32> to vector<8x32xbf16>
    %c0_15 = arith.constant 0 : index
    %c0_16 = arith.constant 0 : index
    %32 = vector.load %arg6[%c0_15, %c0_16] : memref<32x16xbf16, #tpu.memory_space<vmem>>, vector<32x16xbf16>
    %cst_17 = arith.constant dense<0.000000e+00> : vector<8x16xf32>
    %33 = tpu.matmul %31, %32, %cst_17 {dimension_numbers = #tpu.dot_dimension_numbers<[1], [0], [0], [1], [0, 0, 1, 1], [], []>} : vector<8x32xbf16>, vector<32x16xbf16>, vector<8x16xf32> -> vector<8x16xf32>
    %c0_18 = arith.constant 0 : index
    %c0_19 = arith.constant 0 : index
    %34 = vector.load %arg7[%c0_18, %c0_19] : memref<1x16xf32, #tpu.memory_space<vmem>>, vector<1x16xf32>
    %35 = vector.broadcast %34 : vector<1x16xf32> to vector<8x16xf32>
    %36 = arith.addf %33, %35 : vector<8x16xf32>
    %cst_20 = arith.constant 0.000000e+00 : f32
    %37 = vector.broadcast %cst_20 : f32 to vector<8x16xf32>
    %38 = arith.maximumf %36, %37 : vector<8x16xf32>
    %c0_21 = arith.constant 0 : index
    %c0_22 = arith.constant 0 : index
    %39 = vector.load %arg8[%c0_21, %c0_22] : memref<1x16xf32, #tpu.memory_space<vmem>>, vector<1x16xf32>
    %c0_23 = arith.constant 0 : index
    %c0_24 = arith.constant 0 : index
    %40 = vector.load %arg9[%c0_23, %c0_24] : memref<1x16xf32, #tpu.memory_space<vmem>>, vector<1x16xf32>
    %cst_25 = arith.constant dense<0.000000e+00> : vector<8xf32>
    %41 = vector.multi_reduction <add>, %38, %cst_25 [1] : vector<8x16xf32> to vector<8xf32>
    %42 = vector.shape_cast %41 : vector<8xf32> to vector<8x1xf32>
    %cst_26 = arith.constant 1.600000e+01 : f32
    %43 = vector.broadcast %cst_26 : f32 to vector<8x1xf32>
    %44 = arith.divf %42, %43 : vector<8x1xf32>
    %45 = vector.broadcast %44 : vector<8x1xf32> to vector<8x16xf32>
    %46 = arith.subf %38, %45 : vector<8x16xf32>
    %47 = arith.mulf %46, %46 : vector<8x16xf32>
    %cst_27 = arith.constant dense<0.000000e+00> : vector<8xf32>
    %48 = vector.multi_reduction <add>, %47, %cst_27 [1] : vector<8x16xf32> to vector<8xf32>
    %49 = vector.shape_cast %48 : vector<8xf32> to vector<8x1xf32>
    %cst_28 = arith.constant 1.600000e+01 : f32
    %50 = vector.broadcast %cst_28 : f32 to vector<8x1xf32>
    %51 = arith.divf %49, %50 : vector<8x1xf32>
    %cst_29 = arith.constant 9.99999974E-6 : f32
    %52 = vector.broadcast %cst_29 : f32 to vector<8x1xf32>
    %53 = arith.addf %51, %52 : vector<8x1xf32>
    %54 = math.rsqrt %53 : vector<8x1xf32>
    %55 = vector.broadcast %54 : vector<8x1xf32> to vector<8x16xf32>
    %56 = arith.mulf %46, %55 : vector<8x16xf32>
    %57 = vector.broadcast %39 : vector<1x16xf32> to vector<8x16xf32>
    %58 = arith.mulf %56, %57 : vector<8x16xf32>
    %59 = vector.broadcast %40 : vector<1x16xf32> to vector<8x16xf32>
    %60 = arith.addf %58, %59 : vector<8x16xf32>
    %c0_30 = arith.constant 0 : index
    %c0_31 = arith.constant 0 : index
    %61 = vector.load %arg10[%c0_30, %c0_31] : memref<1x16xf32, #tpu.memory_space<vmem>>, vector<1x16xf32>
    %62 = vector.broadcast %61 : vector<1x16xf32> to vector<8x16xf32>
    %63 = arith.mulf %60, %62 : vector<8x16xf32>
    %cst_32 = arith.constant dense<0.000000e+00> : vector<8xf32>
    %64 = vector.multi_reduction <add>, %63, %cst_32 [1] : vector<8x16xf32> to vector<8xf32>
    %65 = vector.shape_cast %64 : vector<8xf32> to vector<8x1xf32>
    %c0_33 = arith.constant 0 : index
    %c0_34 = arith.constant 0 : index
    %66 = vector.load %arg11[%c0_33, %c0_34] : memref<1x1xf32, #tpu.memory_space<vmem>>, vector<1x1xf32>
    %67 = vector.broadcast %66 : vector<1x1xf32> to vector<8x1xf32>
    %68 = arith.addf %65, %67 : vector<8x1xf32>
    %69 = vector.shape_cast %68 : vector<8x1xf32> to vector<1x8xf32>
    %c0_35 = arith.constant 0 : index
    %c0_36 = arith.constant 0 : index
    %70 = vector.load %arg12[%c0_35, %c0_36] : memref<1x8xf32, #tpu.memory_space<vmem>>, vector<1x8xf32>
    tpu.vector_store %arg12[%c0_35, %c0_36], %69 {strides = array<i32>} : memref<1x8xf32, #tpu.memory_space<vmem>>, vector<1x8xf32>,
    return
  }
  func.func @transform_0(%arg0: i32) -> (i32, i32) {
    %c0_i32 = arith.constant 0 : i32
    %c0_i32_0 = arith.constant 0 : i32
    return %arg0, %c0_i32 : i32, i32
  }
  func.func @transform_1(%arg0: i32) -> (i32, i32) {
    %c0_i32 = arith.constant 0 : i32
    %c0_i32_0 = arith.constant 0 : i32
    %c0_i32_1 = arith.constant 0 : i32
    return %c0_i32, %c0_i32_0 : i32, i32
  }
  func.func @transform_2(%arg0: i32) -> (i32, i32) {
    %c0_i32 = arith.constant 0 : i32
    %c0_i32_0 = arith.constant 0 : i32
    %c0_i32_1 = arith.constant 0 : i32
    return %c0_i32, %c0_i32_0 : i32, i32
  }
  func.func @transform_3(%arg0: i32) -> (i32, i32) {
    %c0_i32 = arith.constant 0 : i32
    %c0_i32_0 = arith.constant 0 : i32
    %c0_i32_1 = arith.constant 0 : i32
    return %c0_i32, %c0_i32_0 : i32, i32
  }
  func.func @transform_4(%arg0: i32) -> (i32, i32) {
    %c0_i32 = arith.constant 0 : i32
    %c0_i32_0 = arith.constant 0 : i32
    %c0_i32_1 = arith.constant 0 : i32
    return %c0_i32, %c0_i32_0 : i32, i32
  }
  func.func @transform_5(%arg0: i32) -> (i32, i32) {
    %c0_i32 = arith.constant 0 : i32
    %c0_i32_0 = arith.constant 0 : i32
    %c0_i32_1 = arith.constant 0 : i32
    return %c0_i32, %c0_i32_0 : i32, i32
  }
  func.func @transform_6(%arg0: i32) -> (i32, i32) {
    %c0_i32 = arith.constant 0 : i32
    %c0_i32_0 = arith.constant 0 : i32
    %c0_i32_1 = arith.constant 0 : i32
    return %c0_i32, %c0_i32_0 : i32, i32
  }
  func.func @transform_7(%arg0: i32) -> (i32, i32) {
    %c0_i32 = arith.constant 0 : i32
    %c0_i32_0 = arith.constant 0 : i32
    %c0_i32_1 = arith.constant 0 : i32
    return %c0_i32, %c0_i32_0 : i32, i32
  }
  func.func @transform_8(%arg0: i32) -> (i32, i32) {
    %c0_i32 = arith.constant 0 : i32
    %c0_i32_0 = arith.constant 0 : i32
    %c0_i32_1 = arith.constant 0 : i32
    return %c0_i32, %c0_i32_0 : i32, i32
  }
  func.func @transform_9(%arg0: i32) -> (i32, i32) {
    %c0_i32 = arith.constant 0 : i32
    %c0_i32_0 = arith.constant 0 : i32
    %c0_i32_1 = arith.constant 0 : i32
    return %c0_i32, %c0_i32_0 : i32, i32
  }
  func.func @transform_10(%arg0: i32) -> (i32, i32) {
    %c0_i32 = arith.constant 0 : i32
    %c0_i32_0 = arith.constant 0 : i32
    %c0_i32_1 = arith.constant 0 : i32
    return %c0_i32, %c0_i32_0 : i32, i32
  }
  func.func @transform_11(%arg0: i32) -> (i32, i32) {
    %c0_i32 = arith.constant 0 : i32
    %c0_i32_0 = arith.constant 0 : i32
    return %arg0, %c0_i32 : i32, i32
  }
}

</mosaic_0001>

<llo_original>
// kernel: tpu_custom_call.1
$region0: #{tpu_custom_call.1}
  #allocation0 [shape = 'u32[]', space=smem, size = 0x4, offset = 0x4, fixed_abs, tag = 'smem constant byte address 0x4 - core index']
  #allocation1 [shape = 'u32[144,128]{1,0:T(1,128)}', space=vmem, size = 0x12000, scoped, tag = 'internal scratch']
  #allocation2 [shape = 'f32[1,1]{1,0:T(1,128)S(1)}', space=vmem, size = 0x200, scoped, tag = 'scoped memory for tpu_custom_call.1']
  %s0 = inlined_call_operand.vmem [shape: f32[8,32], index: 0, kind: input, shape index: {}]
  %s1 = inlined_call_operand.vmem [shape: bf16[32,32], index: 1, kind: input, shape index: {}]
  %s2 = inlined_call_operand.vmem [shape: f32[1,32], index: 2, kind: input, shape index: {}]
  %s3 = inlined_call_operand.vmem [shape: f32[1,32], index: 3, kind: input, shape index: {}]
  %s4 = inlined_call_operand.vmem [shape: f32[1,32], index: 4, kind: input, shape index: {}]
  %s5 = inlined_call_operand.vmem [shape: bf16[32,16], index: 5, kind: input, shape index: {}]
  %s6 = inlined_call_operand.vmem [shape: f32[1,16], index: 6, kind: input, shape index: {}]
  %s7 = inlined_call_operand.vmem [shape: f32[1,16], index: 7, kind: input, shape index: {}]
  %s8 = inlined_call_operand.vmem [shape: f32[1,16], index: 8, kind: input, shape index: {}]
  %s9 = inlined_call_operand.vmem [shape: f32[1,16], index: 9, kind: input, shape index: {}]
  %s10 = inlined_call_operand.<no memory space> [shape: f32[1,1], index: 10, kind: input, shape index: {}]
  %s11 = inlined_call_operand.hbm [shape: f32[1,8], index: 11, kind: output, shape index: {}]
  %s12 = sld [smem:[#allocation0]]
  $region54: #{tpu_custom_call.1} parent=0
    _
  %s14 = ssub.s32 1, %s12
  %s15 = scalar_select 0, %s14, %s12
  %v16 = vstv %s10
  %17 = vst [vmem:[#allocation2] sm:$0x1] %v16
  $region1: #{tpu_custom_call.1} parent=0
    #allocation3 [shape = 'u8[512]{0}', space=vmem, size = 0x400, scoped, tag = 'output window, operand 0, single buffered']
    #allocation4 [shape = 's32[1]{0}', space=sflag, size = 0x4, scoped, tag = 'scoped memory for tpu_custom_call.1']
    %18 = vsyncpa [#allocation4], 0
    // Predicated region
    $region2: #{tpu_custom_call.1} parent=1 // pred_check
      _
    $region3: #{tpu_custom_call.1} parent=1 // pred_check_branch
      %20 = sbr.rel (0) target = $region5
    $region4: #{tpu_custom_call.1} parent=1 // pred_region
      _
    $region5: #{tpu_custom_call.1} parent=1 // pred_fallthru
      _
    // Predicated region
    $region6: #{tpu_custom_call.1} parent=1 // pred_check
      _
    $region7: #{tpu_custom_call.1} parent=1 // pred_check_branch
      %22 = sbr.rel (0) target = $region9
    $region8: #{tpu_custom_call.1} parent=1 // pred_region
      _
    $region9: #{tpu_custom_call.1} parent=1 // pred_fallthru
      _
    // Predicated region
    $region10: #{tpu_custom_call.1} parent=1 // pred_check
      _
    $region11: #{tpu_custom_call.1} parent=1 // pred_check_branch
      %24 = sbr.rel (0) target = $region13
    $region12: #{tpu_custom_call.1} parent=1 // pred_region
      _
    $region13: #{tpu_custom_call.1} parent=1 // pred_fallthru
      _
    // Predicated region
    $region14: #{tpu_custom_call.1} parent=1 // pred_check
      _
    $region15: #{tpu_custom_call.1} parent=1 // pred_check_branch
      %26 = sbr.rel (0) target = $region17
    $region16: #{tpu_custom_call.1} parent=1 // pred_region
      _
    $region17: #{tpu_custom_call.1} parent=1 // pred_fallthru
      _
    // Predicated region
    $region18: #{tpu_custom_call.1} parent=1 // pred_check
      _
    $region19: #{tpu_custom_call.1} parent=1 // pred_check_branch
      %28 = sbr.rel (0) target = $region21
    $region20: #{tpu_custom_call.1} parent=1 // pred_region
      _
    $region21: #{tpu_custom_call.1} parent=1 // pred_fallthru
      _
    // Predicated region
    $region22: #{tpu_custom_call.1} parent=1 // pred_check
      _
    $region23: #{tpu_custom_call.1} parent=1 // pred_check_branch
      %30 = sbr.rel (0) target = $region25
    $region24: #{tpu_custom_call.1} parent=1 // pred_region
      _
    $region25: #{tpu_custom_call.1} parent=1 // pred_fallthru
      _
    // Predicated region
    $region26: #{tpu_custom_call.1} parent=1 // pred_check
      _
    $region27: #{tpu_custom_call.1} parent=1 // pred_check_branch
      %32 = sbr.rel (0) target = $region29
    $region28: #{tpu_custom_call.1} parent=1 // pred_region
      _
    $region29: #{tpu_custom_call.1} parent=1 // pred_fallthru
      _
    // Predicated region
    $region30: #{tpu_custom_call.1} parent=1 // pred_check
      _
    $region31: #{tpu_custom_call.1} parent=1 // pred_check_branch
      %34 = sbr.rel (0) target = $region33
    $region32: #{tpu_custom_call.1} parent=1 // pred_region
      _
    $region33: #{tpu_custom_call.1} parent=1 // pred_fallthru
      _
    // Predicated region
    $region34: #{tpu_custom_call.1} parent=1 // pred_check
      _
    $region35: #{tpu_custom_call.1} parent=1 // pred_check_branch
      %36 = sbr.rel (0) target = $region37
    $region36: #{tpu_custom_call.1} parent=1 // pred_region
      _
    $region37: #{tpu_custom_call.1} parent=1 // pred_fallthru
      _
    // Predicated region
    $region38: #{tpu_custom_call.1} parent=1 // pred_check
      _
    $region39: #{tpu_custom_call.1} parent=1 // pred_check_branch
      %38 = sbr.rel (0) target = $region41
    $region40: #{tpu_custom_call.1} parent=1 // pred_region
      _
    $region41: #{tpu_custom_call.1} parent=1 // pred_fallthru
      _
    // Predicated region
    $region42: #{tpu_custom_call.1} parent=1 // pred_check
      _
    $region43: #{tpu_custom_call.1} parent=1 // pred_check_branch
      %40 = sbr.rel (0) target = $region45
    $region44: #{tpu_custom_call.1} parent=1 // pred_region
      _
    $region45: #{tpu_custom_call.1} parent=1 // pred_fallthru
      _
    %v42 = vld [vmem:[%s0] sm:$0xff]
    %v43 = vpack.c.bf16 %v42, %v42
    %v44 = vld [vmem:[%s1] sm:$0xf]
    %v45 = vld [vmem:[%s1 + $0x4] sm:$0xf]
    %v46 = vld [vmem:[%s1 + $0x8] sm:$0xf]
    %v47 = vld [vmem:[%s1 + $0xc] sm:$0xf]
    %v48 = vld [vmem:[%s2] sm:$0x1]
    %v50 = vlaneseq
    %v51 = vshrl.u32 %v50, 7
    %v52 = vsub.s32 0, %v51
    %v53 = vrot.slane %v48, %v52
    %v59 = vunpack.c.l.b16 %v44
    %v60 = vunpack.c.l.b16 %v45
    %v61 = vunpack.c.l.b16 %v46
    %v62 = vunpack.c.l.b16 %v47
    %v63 = vpack.c.b16 %v60, %v59
    %v64 = vpack.c.b16 %v62, %v61
    %vm67 = vcmask 261120
    %v69 = vsel %vm67, %v43, 0
    %71 = vmatprep.subr.bf16.mxu0 0
    %72 = vmatpush1.bf16.msra.mxu0 %v63
    %73 = vmatprep.subr.bf16.mxu0 0
    %74 = vmatpush1.bf16.msra.mxu0 %v64
    %75 = vmatprep.subr.bf16.mxu0 0
    %76 = vmatpush1.bf16.msra.mxu0 0
    %77 = vmatprep.subr.bf16.mxu0 0
    %78 = vmatpush1.bf16.msra.mxu0 0
    %79 = vmatprep.subr.bf16.mxu0 0
    %80 = vmatpush1.bf16.msra.mxu0 0
    %81 = vmatprep.subr.bf16.mxu0 0
    %82 = vmatpush1.bf16.msra.mxu0 0
    %83 = vmatprep.subr.bf16.mxu0 0
    %84 = vmatpush1.bf16.msra.mxu0 0
    %85 = vmatprep.subr.bf16.mxu0 0
    %86 = vmatpush1.bf16.msra.mxu0 0
    %87 = vmatprep.subr.bf16.mxu0 0
    %88 = vmatpush1.bf16.msra.mxu0 0
    %89 = vmatprep.subr.bf16.mxu0 0
    %90 = vmatpush1.bf16.msra.mxu0 0
    %91 = vmatprep.subr.bf16.mxu0 0
    %92 = vmatpush1.bf16.msra.mxu0 0
    %93 = vmatprep.subr.bf16.mxu0 0
    %94 = vmatpush1.bf16.msra.mxu0 0
    %95 = vmatprep.subr.bf16.mxu0 0
    %96 = vmatpush1.bf16.msra.mxu0 0
    %97 = vmatprep.subr.bf16.mxu0 0
    %98 = vmatpush1.bf16.msra.mxu0 0
    %99 = vmatprep.subr.bf16.mxu0 0
    %100 = vmatpush1.bf16.msra.mxu0 0
    %101 = vmatprep.subr.bf16.mxu0 0
    %102 = vmatpush1.bf16.msra.mxu0 0
    %103 = vmatprep.mubr.bf16.mxu0 0
    %104 = vmatmul.mubr.bf16.gmra.mrb[0].mxu0 %v69
    %v105 = vpop.f32.mrb[0].mxu0
    %v106 = vadd.f32 %v53, %v105
    %v107 = vpop.f32.mrb[0].mxu0
    %v108 = vpop.f32.mrb[0].mxu0
    %v109 = vpop.f32.mrb[0].mxu0
    %110 = vdwg.mxu0
    %v111 = vmax.f32 %v106, 0.0
    %v112 = vld [vmem:[%s3] sm:$0x1]
    %v113 = vld [vmem:[%s4] sm:$0x1]
    %v114 = vsel %vm67, %v111, 0.0
    %115 = vadd.xlane.f32.xlu0 %v114
    %v116 = vpop.xlane.xlu0 %115
    %v117 = vrcp.pop 32.0
    %v118 = vmul.f32 %v116, %v117
    %v119 = vsub.f32 %v111, %v118
    %v120 = vmul.f32 %v119, %v119
    %v121 = vsel %vm67, %v120, 0.0
    %122 = vadd.xlane.f32.xlu0 %v121
    %v123 = vpop.xlane.xlu0 %122
    %v124 = vmul.f32 %v123, %v117
    %v125 = vadd.f32 %v124, 1e-05
    %v126 = vrsqrt.pop %v125
    %v127 = vmul.f32 %v119, %v126
    %v129 = vlaneseq
    %v130 = vshrl.u32 %v129, 7
    %v131 = vsub.s32 0, %v130
    %v132 = vrot.slane %v112, %v131
    %v134 = vmul.f32 %v127, %v132
    %v136 = vlaneseq
    %v137 = vshrl.u32 %v136, 7
    %v138 = vsub.s32 0, %v137
    %v139 = vrot.slane %v113, %v138
    %v141 = vadd.f32 %v134, %v139
    %v142 = vpack.c.bf16 %v141, %v141
    %v143 = vld [vmem:[%s5] sm:$0xf]
    %v144 = vld [vmem:[%s5 + $0x4] sm:$0xf]
    %v145 = vld [vmem:[%s5 + $0x8] sm:$0xf]
    %v146 = vld [vmem:[%s5 + $0xc] sm:$0xf]
    %v147 = vld [vmem:[%s6] sm:$0x1]
    %v149 = vlaneseq
    %v150 = vshrl.u32 %v149, 7
    %v151 = vsub.s32 0, %v150
    %v152 = vrot.slane %v147, %v151
    %v158 = vunpack.c.l.b16 %v143
    %v159 = vunpack.c.l.b16 %v144
    %v160 = vunpack.c.l.b16 %v145
    %v161 = vunpack.c.l.b16 %v146
    %v162 = vpack.c.b16 %v159, %v158
    %v163 = vpack.c.b16 %v161, %v160
    %v167 = vsel %vm67, %v142, 0
    %169 = vmatprep.subr.bf16.mxu0 0
    %170 = vmatpush1.bf16.msra.mxu0 %v162
    %171 = vmatprep.subr.bf16.mxu0 0
    %172 = vmatpush1.bf16.msra.mxu0 %v163
    %173 = vmatprep.subr.bf16.mxu0 0
    %174 = vmatpush1.bf16.msra.mxu0 0
    %175 = vmatprep.subr.bf16.mxu0 0
    %176 = vmatpush1.bf16.msra.mxu0 0
    %177 = vmatprep.subr.bf16.mxu0 0
    %178 = vmatpush1.bf16.msra.mxu0 0
    %179 = vmatprep.subr.bf16.mxu0 0
    %180 = vmatpush1.bf16.msra.mxu0 0
    %181 = vmatprep.subr.bf16.mxu0 0
    %182 = vmatpush1.bf16.msra.mxu0 0
    %183 = vmatprep.subr.bf16.mxu0 0
    %184 = vmatpush1.bf16.msra.mxu0 0
    %185 = vmatprep.subr.bf16.mxu0 0
    %186 = vmatpush1.bf16.msra.mxu0 0
    %187 = vmatprep.subr.bf16.mxu0 0
    %188 = vmatpush1.bf16.msra.mxu0 0
    %189 = vmatprep.subr.bf16.mxu0 0
    %190 = vmatpush1.bf16.msra.mxu0 0
    %191 = vmatprep.subr.bf16.mxu0 0
    %192 = vmatpush1.bf16.msra.mxu0 0
    %193 = vmatprep.subr.bf16.mxu0 0
    %194 = vmatpush1.bf16.msra.mxu0 0
    %195 = vmatprep.subr.bf16.mxu0 0
    %196 = vmatpush1.bf16.msra.mxu0 0
    %197 = vmatprep.subr.bf16.mxu0 0
    %198 = vmatpush1.bf16.msra.mxu0 0
    %199 = vmatprep.subr.bf16.mxu0 0
    %200 = vmatpush1.bf16.msra.mxu0 0
    %201 = vmatprep.mubr.bf16.mxu0 0
    %202 = vmatmul.mubr.bf16.gmra.mrb[0].mxu0 %v167
    %v203 = vpop.f32.mrb[0].mxu0
    %v204 = vadd.f32 %v152, %v203
    %v205 = vpop.f32.mrb[0].mxu0
    %v206 = vpop.f32.mrb[0].mxu0
    %v207 = vpop.f32.mrb[0].mxu0
    %208 = vdwg.mxu0
    %v209 = vmax.f32 %v204, 0.0
    %v210 = vld [vmem:[%s7] sm:$0x1]
    %v211 = vld [vmem:[%s8] sm:$0x1]
    %vm212 = vcmask 130048
    %v213 = vsel %vm212, %v209, 0.0
    %214 = vadd.xlane.f32.xlu0 %v213
    %v215 = vpop.xlane.xlu0 %214
    %v216 = vrcp.pop 16.0
    %v217 = vmul.f32 %v215, %v216
    %v218 = vsub.f32 %v209, %v217
    %v219 = vmul.f32 %v218, %v218
    %v220 = vsel %vm212, %v219, 0.0
    %221 = vadd.xlane.f32.xlu0 %v220
    %v222 = vpop.xlane.xlu0 %221
    %v223 = vmul.f32 %v222, %v216
    %v224 = vadd.f32 %v223, 1e-05
    %v225 = vrsqrt.pop %v224
    %v226 = vmul.f32 %v218, %v225
    %v228 = vlaneseq
    %v229 = vshrl.u32 %v228, 7
    %v230 = vsub.s32 0, %v229
    %v231 = vrot.slane %v210, %v230
    %v233 = vmul.f32 %v226, %v231
    %v235 = vlaneseq
    %v236 = vshrl.u32 %v235, 7
    %v237 = vsub.s32 0, %v236
    %v238 = vrot.slane %v211, %v237
    %v240 = vadd.f32 %v233, %v238
    %v241 = vld [vmem:[%s9] sm:$0x1]
    %v243 = vlaneseq
    %v244 = vshrl.u32 %v243, 7
    %v245 = vsub.s32 0, %v244
    %v246 = vrot.slane %v241, %v245
    %v248 = vmul.f32 %v240, %v246
    %v249 = vsel %vm212, %v248, 0.0
    %250 = vadd.xlane.f32.xlu0 %v249
    %v251 = vpop.xlane.xlu0 %250
    %v252 = vld [vmem:[#allocation2] sm:$0x1]
    %v254 = vlaneseq
    %v255 = vshrl.u32 %v254, 7
    %v256 = vsub.s32 0, %v255
    %v257 = vrot.slane %v252, %v256
    %v259 = vadd.f32 %v251, %v257
    %261 = vset.pattern.permute.xlu0 0
    %262 = vperm.xlu0 %261, %v259
    %v263 = vpop.permute.xlu0 %262
    %v264 = vlaneseq
    %v265 = vand.u32 %v264, 127
    %v266 = vlaneseq
    %v267 = vshrl.u32 %v266, 7
    %v268 = vsub.s32 %v265, %v267
    %v269 = vrot.slane %v263, %v268
    %vm271 = vcmask 57344
    %272 = vst.msk [vmem:[#allocation3] sm:$0x1] %vm271, %v269
    // Predicated region
    $region46: #{tpu_custom_call.1} parent=1 // pred_check
      _
    $region47: #{tpu_custom_call.1} parent=1 // pred_check_branch
      %274 = sbr.rel (0) target = $region49
    $region48: #{tpu_custom_call.1} parent=1 // pred_region
      %s276 = ssub.s32 16, 16
      %277 = vsyncadd [#allocation4], %s276
      %s279 = sshll.u32 [#allocation3], 4
      %s280 = int_to_ptr.vmem [resolvable:$true] %s279
      %282 = dma.vmem_to_hbm [thread:$0]  %s280, 16, %s11, [#allocation4]
    $region49: #{tpu_custom_call.1} parent=1 // pred_fallthru
      _
    // Predicated region
    $region50: #{tpu_custom_call.1} parent=1 // pred_check
      _
    $region51: #{tpu_custom_call.1} parent=1 // pred_check_branch
      %284 = sbr.rel (0) target = $region53
    $region52: #{tpu_custom_call.1} parent=1 // pred_region
      %285 = dma.done [#allocation4], 16
    $region53: #{tpu_custom_call.1} parent=1 // pred_fallthru
      _
    %286 = vsyncpa [#allocation4], 1

// kernel: tpu_custom_call.1
$region0: #{tpu_custom_call.1}
  #allocation0 [shape = 'u32[]', space=smem, size = 0x4, offset = 0x4, fixed_abs, tag = 'smem constant byte address 0x4 - core index']
  #allocation1 [shape = 'u32[144,128]{1,0:T(1,128)}', space=vmem, size = 0x12000, scoped, tag = 'internal scratch']
  #allocation2 [shape = 'f32[1,1]{1,0:T(1,128)S(1)}', space=vmem, size = 0x200, scoped, tag = 'scoped memory for tpu_custom_call.1']
  %s0 = inlined_call_operand.vmem [shape: f32[8,32], index: 0, kind: input, shape index: {}]
  %s1 = inlined_call_operand.vmem [shape: bf16[32,32], index: 1, kind: input, shape index: {}]
  %s2 = inlined_call_operand.vmem [shape: f32[1,32], index: 2, kind: input, shape index: {}]
  %s3 = inlined_call_operand.vmem [shape: f32[1,32], index: 3, kind: input, shape index: {}]
  %s4 = inlined_call_operand.vmem [shape: f32[1,32], index: 4, kind: input, shape index: {}]
  %s5 = inlined_call_operand.vmem [shape: bf16[32,16], index: 5, kind: input, shape index: {}]
  %s6 = inlined_call_operand.vmem [shape: f32[1,16], index: 6, kind: input, shape index: {}]
  %s7 = inlined_call_operand.vmem [shape: f32[1,16], index: 7, kind: input, shape index: {}]
  %s8 = inlined_call_operand.vmem [shape: f32[1,16], index: 8, kind: input, shape index: {}]
  %s9 = inlined_call_operand.vmem [shape: f32[1,16], index: 9, kind: input, shape index: {}]
  %s10 = inlined_call_operand.<no memory space> [shape: f32[1,1], index: 10, kind: input, shape index: {}]
  %s11 = inlined_call_operand.hbm [shape: f32[1,8], index: 11, kind: output, shape index: {}]
  %s12 = sld [smem:[#allocation0]]
  $region54: #{tpu_custom_call.1} parent=0
    _
  %s14 = ssub.s32 1, %s12
  %s15 = scalar_select 0, %s14, %s12
  %v16 = vstv %s10
  %17 = vst [vmem:[#allocation2] sm:$0x1] %v16
  $region1: #{tpu_custom_call.1} parent=0
    #allocation3 [shape = 'u8[512]{0}', space=vmem, size = 0x400, scoped, tag = 'output window, operand 0, single buffered']
    #allocation4 [shape = 's32[1]{0}', space=sflag, size = 0x4, scoped, tag = 'scoped memory for tpu_custom_call.1']
    %18 = vsyncpa [#allocation4], 0
    // Predicated region
    $region2: #{tpu_custom_call.1} parent=1 // pred_check
      _
    $region3: #{tpu_custom_call.1} parent=1 // pred_check_branch
      %20 = sbr.rel (0) target = $region5
    $region4: #{tpu_custom_call.1} parent=1 // pred_region
      _
    $region5: #{tpu_custom_call.1} parent=1 // pred_fallthru
      _
    // Predicated region
    $region6: #{tpu_custom_call.1} parent=1 // pred_check
      _
    $region7: #{tpu_custom_call.1} parent=1 // pred_check_branch
      %22 = sbr.rel (0) target = $region9
    $region8: #{tpu_custom_call.1} parent=1 // pred_region
      _
    $region9: #{tpu_custom_call.1} parent=1 // pred_fallthru
      _
    // Predicated region
    $region10: #{tpu_custom_call.1} parent=1 // pred_check
      _
    $region11: #{tpu_custom_call.1} parent=1 // pred_check_branch
      %24 = sbr.rel (0) target = $region13
    $region12: #{tpu_custom_call.1} parent=1 // pred_region
      _
    $region13: #{tpu_custom_call.1} parent=1 // pred_fallthru
      _
    // Predicated region
    $region14: #{tpu_custom_call.1} parent=1 // pred_check
      _
    $region15: #{tpu_custom_call.1} parent=1 // pred_check_branch
      %26 = sbr.rel (0) target = $region17
    $region16: #{tpu_custom_call.1} parent=1 // pred_region
      _
    $region17: #{tpu_custom_call.1} parent=1 // pred_fallthru
      _
    // Predicated region
    $region18: #{tpu_custom_call.1} parent=1 // pred_check
      _
    $region19: #{tpu_custom_call.1} parent=1 // pred_check_branch
      %28 = sbr.rel (0) target = $region21
    $region20: #{tpu_custom_call.1} parent=1 // pred_region
      _
    $region21: #{tpu_custom_call.1} parent=1 // pred_fallthru
      _
    // Predicated region
    $region22: #{tpu_custom_call.1} parent=1 // pred_check
      _
    $region23: #{tpu_custom_call.1} parent=1 // pred_check_branch
      %30 = sbr.rel (0) target = $region25
    $region24: #{tpu_custom_call.1} parent=1 // pred_region
      _
    $region25: #{tpu_custom_call.1} parent=1 // pred_fallthru
      _
    // Predicated region
    $region26: #{tpu_custom_call.1} parent=1 // pred_check
      _
    $region27: #{tpu_custom_call.1} parent=1 // pred_check_branch
      %32 = sbr.rel (0) target = $region29
    $region28: #{tpu_custom_call.1} parent=1 // pred_region
      _
    $region29: #{tpu_custom_call.1} parent=1 // pred_fallthru
      _
    // Predicated region
    $region30: #{tpu_custom_call.1} parent=1 // pred_check
      _
    $region31: #{tpu_custom_call.1} parent=1 // pred_check_branch
      %34 = sbr.rel (0) target = $region33
    $region32: #{tpu_custom_call.1} parent=1 // pred_region
      _
    $region33: #{tpu_custom_call.1} parent=1 // pred_fallthru
      _
    // Predicated region
    $region34: #{tpu_custom_call.1} parent=1 // pred_check
      _
    $region35: #{tpu_custom_call.1} parent=1 // pred_check_branch
      %36 = sbr.rel (0) target = $region37
    $region36: #{tpu_custom_call.1} parent=1 // pred_region
      _
    $region37: #{tpu_custom_call.1} parent=1 // pred_fallthru
      _
    // Predicated region
    $region38: #{tpu_custom_call.1} parent=1 // pred_check
      _
    $region39: #{tpu_custom_call.1} parent=1 // pred_check_branch
      %38 = sbr.rel (0) target = $region41
    $region40: #{tpu_custom_call.1} parent=1 // pred_region
      _
    $region41: #{tpu_custom_call.1} parent=1 // pred_fallthru
      _
    // Predicated region
    $region42: #{tpu_custom_call.1} parent=1 // pred_check
      _
    $region43: #{tpu_custom_call.1} parent=1 // pred_check_branch
      %40 = sbr.rel (0) target = $region45
    $region44: #{tpu_custom_call.1} parent=1 // pred_region
      _
    $region45: #{tpu_custom_call.1} parent=1 // pred_fallthru
      _
    %v42 = vld [vmem:[%s0] sm:$0xff]
    %v43 = vpack.c.bf16 %v42, %v42
    %v44 = vld [vmem:[%s1] sm:$0xf]
    %v45 = vld [vmem:[%s1 + $0x4] sm:$0xf]
    %v46 = vld [vmem:[%s1 + $0x8] sm:$0xf]
    %v47 = vld [vmem:[%s1 + $0xc] sm:$0xf]
    %v48 = vld [vmem:[%s2] sm:$0x1]
    %v50 = vlaneseq
    %v51 = vshrl.u32 %v50, 7
    %v52 = vsub.s32 0, %v51
    %v53 = vrot.slane %v48, %v52
    %v59 = vunpack.c.l.b16 %v44
    %v60 = vunpack.c.l.b16 %v45
    %v61 = vunpack.c.l.b16 %v46
    %v62 = vunpack.c.l.b16 %v47
    %v63 = vpack.c.b16 %v60, %v59
    %v64 = vpack.c.b16 %v62, %v61
    %vm67 = vcmask 261120
    %v69 = vsel %vm67, %v43, 0
    %71 = vmatprep.subr.bf16.mxu0 0
    %72 = vmatpush1.bf16.msra.mxu0 %v63
    %73 = vmatprep.subr.bf16.mxu0 0
    %74 = vmatpush1.bf16.msra.mxu0 %v64
    %75 = vmatprep.subr.bf16.mxu0 0
    %76 = vmatpush1.bf16.msra.mxu0 0
    %77 = vmatprep.subr.bf16.mxu0 0
    %78 = vmatpush1.bf16.msra.mxu0 0
    %79 = vmatprep.subr.bf16.mxu0 0
    %80 = vmatpush1.bf16.msra.mxu0 0
    %81 = vmatprep.subr.bf16.mxu0 0
    %82 = vmatpush1.bf16.msra.mxu0 0
    %83 = vmatprep.subr.bf16.mxu0 0
    %84 = vmatpush1.bf16.msra.mxu0 0
    %85 = vmatprep.subr.bf16.mxu0 0
    %86 = vmatpush1.bf16.msra.mxu0 0
    %87 = vmatprep.subr.bf16.mxu0 0
    %88 = vmatpush1.bf16.msra.mxu0 0
    %89 = vmatprep.subr.bf16.mxu0 0
    %90 = vmatpush1.bf16.msra.mxu0 0
    %91 = vmatprep.subr.bf16.mxu0 0
    %92 = vmatpush1.bf16.msra.mxu0 0
    %93 = vmatprep.subr.bf16.mxu0 0
    %94 = vmatpush1.bf16.msra.mxu0 0
    %95 = vmatprep.subr.bf16.mxu0 0
    %96 = vmatpush1.bf16.msra.mxu0 0
    %97 = vmatprep.subr.bf16.mxu0 0
    %98 = vmatpush1.bf16.msra.mxu0 0
    %99 = vmatprep.subr.bf16.mxu0 0
    %100 = vmatpush1.bf16.msra.mxu0 0
    %101 = vmatprep.subr.bf16.mxu0 0
    %102 = vmatpush1.bf16.msra.mxu0 0
    %103 = vmatprep.mubr.bf16.mxu0 0
    %104 = vmatmul.mubr.bf16.gmra.mrb[0].mxu0 %v69
    %v105 = vpop.f32.mrb[0].mxu0
    %v106 = vadd.f32 %v53, %v105
    %v107 = vpop.f32.mrb[0].mxu0
    %v108 = vpop.f32.mrb[0].mxu0
    %v109 = vpop.f32.mrb[0].mxu0
    %110 = vdwg.mxu0
    %v111 = vmax.f32 %v106, 0.0
    %v112 = vld [vmem:[%s3] sm:$0x1]
    %v113 = vld [vmem:[%s4] sm:$0x1]
    %v114 = vsel %vm67, %v111, 0.0
    %115 = vadd.xlane.f32.xlu0 %v114
    %v116 = vpop.xlane.xlu0 %115
    %v117 = vrcp.pop 32.0
    %v118 = vmul.f32 %v116, %v117
    %v119 = vsub.f32 %v111, %v118
    %v120 = vmul.f32 %v119, %v119
    %v121 = vsel %vm67, %v120, 0.0
    %122 = vadd.xlane.f32.xlu0 %v121
    %v123 = vpop.xlane.xlu0 %122
    %v124 = vmul.f32 %v123, %v117
    %v125 = vadd.f32 %v124, 1e-05
    %v126 = vrsqrt.pop %v125
    %v127 = vmul.f32 %v119, %v126
    %v129 = vlaneseq
    %v130 = vshrl.u32 %v129, 7
    %v131 = vsub.s32 0, %v130
    %v132 = vrot.slane %v112, %v131
    %v134 = vmul.f32 %v127, %v132
    %v136 = vlaneseq
    %v137 = vshrl.u32 %v136, 7
    %v138 = vsub.s32 0, %v137
    %v139 = vrot.slane %v113, %v138
    %v141 = vadd.f32 %v134, %v139
    %v142 = vpack.c.bf16 %v141, %v141
    %v143 = vld [vmem:[%s5] sm:$0xf]
    %v144 = vld [vmem:[%s5 + $0x4] sm:$0xf]
    %v145 = vld [vmem:[%s5 + $0x8] sm:$0xf]
    %v146 = vld [vmem:[%s5 + $0xc] sm:$0xf]
    %v147 = vld [vmem:[%s6] sm:$0x1]
    %v149 = vlaneseq
    %v150 = vshrl.u32 %v149, 7
    %v151 = vsub.s32 0, %v150
    %v152 = vrot.slane %v147, %v151
    %v158 = vunpack.c.l.b16 %v143
    %v159 = vunpack.c.l.b16 %v144
    %v160 = vunpack.c.l.b16 %v145
    %v161 = vunpack.c.l.b16 %v146
    %v162 = vpack.c.b16 %v159, %v158
    %v163 = vpack.c.b16 %v161, %v160
    %v167 = vsel %vm67, %v142, 0
    %169 = vmatprep.subr.bf16.mxu0 0
    %170 = vmatpush1.bf16.msra.mxu0 %v162
    %171 = vmatprep.subr.bf16.mxu0 0
    %172 = vmatpush1.bf16.msra.mxu0 %v163
    %173 = vmatprep.subr.bf16.mxu0 0
    %174 = vmatpush1.bf16.msra.mxu0 0
    %175 = vmatprep.subr.bf16.mxu0 0
    %176 = vmatpush1.bf16.msra.mxu0 0
    %177 = vmatprep.subr.bf16.mxu0 0
    %178 = vmatpush1.bf16.msra.mxu0 0
    %179 = vmatprep.subr.bf16.mxu0 0
    %180 = vmatpush1.bf16.msra.mxu0 0
    %181 = vmatprep.subr.bf16.mxu0 0
    %182 = vmatpush1.bf16.msra.mxu0 0
    %183 = vmatprep.subr.bf16.mxu0 0
    %184 = vmatpush1.bf16.msra.mxu0 0
    %185 = vmatprep.subr.bf16.mxu0 0
    %186 = vmatpush1.bf16.msra.mxu0 0
    %187 = vmatprep.subr.bf16.mxu0 0
    %188 = vmatpush1.bf16.msra.mxu0 0
    %189 = vmatprep.subr.bf16.mxu0 0
    %190 = vmatpush1.bf16.msra.mxu0 0
    %191 = vmatprep.subr.bf16.mxu0 0
    %192 = vmatpush1.bf16.msra.mxu0 0
    %193 = vmatprep.subr.bf16.mxu0 0
    %194 = vmatpush1.bf16.msra.mxu0 0
    %195 = vmatprep.subr.bf16.mxu0 0
    %196 = vmatpush1.bf16.msra.mxu0 0
    %197 = vmatprep.subr.bf16.mxu0 0
    %198 = vmatpush1.bf16.msra.mxu0 0
    %199 = vmatprep.subr.bf16.mxu0 0
    %200 = vmatpush1.bf16.msra.mxu0 0
    %201 = vmatprep.mubr.bf16.mxu0 0
    %202 = vmatmul.mubr.bf16.gmra.mrb[0].mxu0 %v167
    %v203 = vpop.f32.mrb[0].mxu0
    %v204 = vadd.f32 %v152, %v203
    %v205 = vpop.f32.mrb[0].mxu0
    %v206 = vpop.f32.mrb[0].mxu0
    %v207 = vpop.f32.mrb[0].mxu0
    %208 = vdwg.mxu0
    %v209 = vmax.f32 %v204, 0.0
    %v210 = vld [vmem:[%s7] sm:$0x1]
    %v211 = vld [vmem:[%s8] sm:$0x1]
    %vm212 = vcmask 130048
    %v213 = vsel %vm212, %v209, 0.0
    %214 = vadd.xlane.f32.xlu0 %v213
    %v215 = vpop.xlane.xlu0 %214
    %v216 = vrcp.pop 16.0
    %v217 = vmul.f32 %v215, %v216
    %v218 = vsub.f32 %v209, %v217
    %v219 = vmul.f32 %v218, %v218
    %v220 = vsel %vm212, %v219, 0.0
    %221 = vadd.xlane.f32.xlu0 %v220
    %v222 = vpop.xlane.xlu0 %221
    %v223 = vmul.f32 %v222, %v216
    %v224 = vadd.f32 %v223, 1e-05
    %v225 = vrsqrt.pop %v224
    %v226 = vmul.f32 %v218, %v225
    %v228 = vlaneseq
    %v229 = vshrl.u32 %v228, 7
    %v230 = vsub.s32 0, %v229
    %v231 = vrot.slane %v210, %v230
    %v233 = vmul.f32 %v226, %v231
    %v235 = vlaneseq
    %v236 = vshrl.u32 %v235, 7
    %v237 = vsub.s32 0, %v236
    %v238 = vrot.slane %v211, %v237
    %v240 = vadd.f32 %v233, %v238
    %v241 = vld [vmem:[%s9] sm:$0x1]
    %v243 = vlaneseq
    %v244 = vshrl.u32 %v243, 7
    %v245 = vsub.s32 0, %v244
    %v246 = vrot.slane %v241, %v245
    %v248 = vmul.f32 %v240, %v246
    %v249 = vsel %vm212, %v248, 0.0
    %250 = vadd.xlane.f32.xlu0 %v249
    %v251 = vpop.xlane.xlu0 %250
    %v252 = vld [vmem:[#allocation2] sm:$0x1]
    %v254 = vlaneseq
    %v255 = vshrl.u32 %v254, 7
    %v256 = vsub.s32 0, %v255
    %v257 = vrot.slane %v252, %v256
    %v259 = vadd.f32 %v251, %v257
    %261 = vset.pattern.permute.xlu0 0
    %262 = vperm.xlu0 %261, %v259
    %v263 = vpop.permute.xlu0 %262
    %v264 = vlaneseq
    %v265 = vand.u32 %v264, 127
    %v266 = vlaneseq
    %v267 = vshrl.u32 %v266, 7
    %v268 = vsub.s32 %v265, %v267
    %v269 = vrot.slane %v263, %v268
    %vm271 = vcmask 57344
    %272 = vst.msk [vmem:[#allocation3] sm:$0x1] %vm271, %v269
    // Predicated region
    $region46: #{tpu_custom_call.1} parent=1 // pred_check
      _
    $region47: #{tpu_custom_call.1} parent=1 // pred_check_branch
      %274 = sbr.rel (0) target = $region49
    $region48: #{tpu_custom_call.1} parent=1 // pred_region
      %s276 = ssub.s32 16, 16
      %277 = vsyncadd [#allocation4], %s276
      %s279 = sshll.u32 [#allocation3], 4
      %s280 = int_to_ptr.vmem [resolvable:$true] %s279
      %282 = dma.vmem_to_hbm [thread:$0]  %s280, 16, %s11, [#allocation4]
    $region49: #{tpu_custom_call.1} parent=1 // pred_fallthru
      _
    // Predicated region
    $region50: #{tpu_custom_call.1} parent=1 // pred_check
      _
    $region51: #{tpu_custom_call.1} parent=1 // pred_check_branch
      %284 = sbr.rel (0) target = $region53
    $region52: #{tpu_custom_call.1} parent=1 // pred_region
      %285 = dma.done [#allocation4], 16
    $region53: #{tpu_custom_call.1} parent=1 // pred_fallthru
      _
    %286 = vsyncpa [#allocation4], 1

</llo_original>
